<compile_context>
chip_gen: v5e
topology: v5e:2x2
jax: 0.10.0
libtpu: 0.0.40
codegen_flags: <defaults>
</compile_context>

<pallas_src>
import jax
import jax.numpy as jnp
from jax.experimental import pallas as pl
from jax.experimental.pallas import tpu as pltpu

_OUT_FEATURES = 51
_OUT_PADDED = 128  # lane-dense output slab; sliced back to 51 outside the kernel


def _regression_head_kernel(x_ref, w_ref, b_ref, o_ref):
    # Fused per-batch-tile: MXU matmul (f32 accumulate) + bias add (VPU) + tanh (EUP).
    y = jnp.dot(x_ref[...], w_ref[...], preferred_element_type=jnp.float32)
    o_ref[...] = jnp.tanh(y + b_ref[...]).astype(o_ref.dtype)


def prepare_params(weight, bias, *, compute_dtype=jnp.float32):
    """One-time parameter prep (hoisted out of the per-call path).

    weight: (51, F) PyTorch layout; bias: (51,).
    Returns (w_padded, b_padded): (F, 128) in compute_dtype and (1, 128) f32, with
    columns 51..127 zero so the extra output lanes are exactly tanh(0+0)=0 garbage
    that gets sliced away.
    """
    F = weight.shape[1]
    w_pad = jnp.zeros((F, _OUT_PADDED), compute_dtype)
    w_pad = w_pad.at[:, :_OUT_FEATURES].set(weight.T.astype(compute_dtype))
    b_pad = jnp.zeros((1, _OUT_PADDED), jnp.float32)
    b_pad = b_pad.at[:, :_OUT_FEATURES].set(bias.astype(jnp.float32))
    return w_pad, b_pad


def _pick_tm(B, F, itemsize, x_budget_bytes=16 * 1024 * 1024):
    """Pick a batch tile: big enough to hit HBM roofline, small enough that the
    double-buffered x tile stays within budget (safe on v7x's 64 MiB VMEM)."""
    tm_max = (x_budget_bytes // (2 * F * itemsize)) // 8 * 8
    tm_max = max(8, min(1024, tm_max))
    if B <= tm_max:
        return B  # single block over the batch (block dim == full array dim is legal)
    return tm_max


def regression_head(x, w_padded, b_padded, *, tm=None):
    """x: (B, 18, dim_embed); w_padded: (F, 128); b_padded: (1, 128)."""
    B = x.shape[0]
    F = x.shape[1] * x.shape[2]
    compute_dtype = w_padded.dtype
    itemsize = jnp.dtype(compute_dtype).itemsize

    x_flat = x.reshape(B, F).astype(compute_dtype)  # glue: flatten(start_dim=1)

    if tm is None:
        tm = _pick_tm(B, F, itemsize)
    grid = (pl.cdiv(B, tm),)

    cost = pl.CostEstimate(
        flops=2 * B * F * _OUT_PADDED,
        transcendentals=B * _OUT_PADDED,
        bytes_accessed=(B * F + F * _OUT_PADDED) * itemsize
        + (B * _OUT_PADDED + _OUT_PADDED) * 4,
    )

    out_padded = pl.pallas_call(
        _regression_head_kernel,
        out_shape=jax.ShapeDtypeStruct((B, _OUT_PADDED), jnp.float32),
        grid=grid,
        in_specs=[
            # Streamed, double-buffered activation tiles.
            pl.BlockSpec((tm, F), lambda i: (i, 0)),
            # VMEM-resident weight / bias: constant index_map -> DMA'd once.
            pl.BlockSpec((F, _OUT_PADDED), lambda i: (0, 0)),
            pl.BlockSpec((1, _OUT_PADDED), lambda i: (0, 0)),
        ],
        out_specs=pl.BlockSpec((tm, _OUT_PADDED), lambda i: (i, 0)),
        compiler_params=pltpu.CompilerParams(
            dimension_semantics=("parallel",),       # shards batch tiles across TCs on v7x
            vmem_limit_bytes=48 * 1024 * 1024,       # safe on 64 MiB (v7x) and 128 MiB (v5e/v6e)
        ),
        cost_estimate=cost,
    )(x_flat, w_padded, b_padded)

    return out_padded[:, :_OUT_FEATURES]


if __name__ == "__main__":
    key = jax.random.PRNGKey(0)
    k_x, k_w, k_b, k_x2 = jax.random.split(key, 4)

    # --- Primary check: small shapes, f32 path, tight tolerance (matches module) ---
    dim_embed = 32
    B = 2
    F = 18 * dim_embed
    bound = 1.0 / jnp.sqrt(F)
    weight = jax.random.uniform(k_w, (_OUT_FEATURES, F), jnp.float32, -bound, bound)
    bias = jax.random.uniform(k_b, (_OUT_FEATURES,), jnp.float32, -bound, bound)
    x = jax.random.normal(k_x, (B, 18, dim_embed), jnp.float32)

    w_f32, b_pad = prepare_params(weight, bias, compute_dtype=jnp.float32)
    out = jax.block_until_ready(regression_head(x, w_f32, b_pad))

    ref = jnp.tanh(x.reshape(B, -1) @ weight.T + bias)
    assert out.shape == (B, _OUT_FEATURES)
    assert jnp.allclose(out, ref, atol=1e-5, rtol=1e-5), "f32 mismatch vs reference"

    # --- Secondary check: tiled batch grid (ragged last block) + bf16 streaming ---
    B2 = 208  # with tm=64 -> grid of 4 blocks, last block partially out of bounds
    x2 = jax.random.normal(k_x2, (B2, 18, dim_embed), jnp.float32)
    w_bf16, b_pad2 = prepare_params(weight, bias, compute_dtype=jnp.bfloat16)
    out2 = jax.block_until_ready(regression_head(x2, w_bf16, b_pad2, tm=64))

    ref2 = jnp.tanh(
        x2.reshape(B2, -1).astype(jnp.bfloat16).astype(jnp.float32)
        @ weight.T.astype(jnp.bfloat16).astype(jnp.float32)
        + bias
    )
    assert out2.shape == (B2, _OUT_FEATURES)
    assert jnp.allclose(out2, ref2, atol=2e-2, rtol=2e-2), "bf16 mismatch vs reference"

    print("KERNEL_OK")
</pallas_src>

<mosaic_0001>
module attributes {stable_mosaic.version = 11 : i64} {
  func.func @_regression_head_kernel(%arg0: i32, %arg1: memref<2x576xf32, #tpu.memory_space<vmem>>, %arg2: memref<576x128xf32, #tpu.memory_space<vmem>>, %arg3: memref<1x128xf32, #tpu.memory_space<vmem>>, %arg4: memref<2x128xf32, #tpu.memory_space<vmem>>) attributes {dimension_semantics = [#tpu.dimension_semantics<parallel>], iteration_bounds = array<i64: 1>, scalar_prefetch = 0 : i64, scratch_operands = 0 : i64, tpu.core_type = #tpu.core_type<tc>, window_params = [{transform_indices = @transform_0, window_bounds = array<i64: 2, 576>}, {pipeline_mode = #tpu.pipeline_mode<synchronous>, transform_indices = @transform_1, window_bounds = array<i64: 576, 128>}, {pipeline_mode = #tpu.pipeline_mode<synchronous>, transform_indices = @transform_2, window_bounds = array<i64: 1, 128>}, {transform_indices = @transform_3, window_bounds = array<i64: 2, 128>}]} {
    %c0 = arith.constant 0 : index
    %c0_0 = arith.constant 0 : index
    %0 = vector.load %arg1[%c0, %c0_0] : memref<2x576xf32, #tpu.memory_space<vmem>>, vector<2x576xf32>
    %c0_1 = arith.constant 0 : index
    %c0_2 = arith.constant 0 : index
    %1 = vector.load %arg2[%c0_1, %c0_2] : memref<576x128xf32, #tpu.memory_space<vmem>>, vector<576x128xf32>
    %cst = arith.constant dense<0.000000e+00> : vector<2x128xf32>
    %2 = tpu.matmul %0, %1, %cst {dimension_numbers = #tpu.dot_dimension_numbers<[1], [0], [0], [1], [0, 0, 1, 1], [], []>} : vector<2x576xf32>, vector<576x128xf32>, vector<2x128xf32> -> vector<2x128xf32>
    %c0_3 = arith.constant 0 : index
    %c0_4 = arith.constant 0 : index
    %3 = vector.load %arg3[%c0_3, %c0_4] : memref<1x128xf32, #tpu.memory_space<vmem>>, vector<1x128xf32>
    %4 = vector.broadcast %3 : vector<1x128xf32> to vector<2x128xf32>
    %5 = arith.addf %2, %4 : vector<2x128xf32>
    %6 = math.tanh %5 : vector<2x128xf32>
    %c0_5 = arith.constant 0 : index
    %c0_6 = arith.constant 0 : index
    %7 = vector.load %arg4[%c0_5, %c0_6] : memref<2x128xf32, #tpu.memory_space<vmem>>, vector<2x128xf32>
    tpu.vector_store %arg4[%c0_5, %c0_6], %6 {strides = array<i32>} : memref<2x128xf32, #tpu.memory_space<vmem>>, vector<2x128xf32>,
    return
  }
  func.func @transform_0(%arg0: i32) -> (i32, i32) {
    %c0_i32 = arith.constant 0 : i32
    %c0_i32_0 = arith.constant 0 : i32
    return %arg0, %c0_i32 : i32, i32
  }
  func.func @transform_1(%arg0: i32) -> (i32, i32) {
    %c0_i32 = arith.constant 0 : i32
    %c0_i32_0 = arith.constant 0 : i32
    %c0_i32_1 = arith.constant 0 : i32
    return %c0_i32, %c0_i32_0 : i32, i32
  }
  func.func @transform_2(%arg0: i32) -> (i32, i32) {
    %c0_i32 = arith.constant 0 : i32
    %c0_i32_0 = arith.constant 0 : i32
    %c0_i32_1 = arith.constant 0 : i32
    return %c0_i32, %c0_i32_0 : i32, i32
  }
  func.func @transform_3(%arg0: i32) -> (i32, i32) {
    %c0_i32 = arith.constant 0 : i32
    %c0_i32_0 = arith.constant 0 : i32
    return %arg0, %c0_i32 : i32, i32
  }
}

</mosaic_0001>

<llo_original>
// kernel: tpu_custom_call.1
$region0: #{tpu_custom_call.1}
  #allocation0 [shape = 'u32[]', space=smem, size = 0x4, offset = 0x4, fixed_abs, tag = 'smem constant byte address 0x4 - core index']
  #allocation1 [shape = 'u32[72,128]{1,0:T(1,128)}', space=vmem, size = 0x9000, scoped, tag = 'internal scratch']
  %s0 = inlined_call_operand.hbm [shape: f32[2,576], index: 0, kind: input, shape index: {}]
  %s1 = inlined_call_operand.hbm [shape: f32[576,128], index: 1, kind: input, shape index: {}]
  %s2 = inlined_call_operand.vmem [shape: f32[1,128], index: 2, kind: input, shape index: {}]
  %s3 = inlined_call_operand.hbm [shape: f32[2,128], index: 3, kind: output, shape index: {}]
  %s4 = sld [smem:[#allocation0]]
  $region30: #{tpu_custom_call.1} parent=0
    _
  %s6 = ssub.s32 1, %s4
  %s7 = scalar_select 0, %s6, %s4
  $region1: #{tpu_custom_call.1} parent=0
    #allocation2 [shape = 'u8[5120]{0}', space=vmem, size = 0x1400, scoped, tag = 'input window, operand 0, single buffered']
    #allocation3 [shape = 's32[1]{0}', space=sflag, size = 0x4, scoped, tag = 'scoped memory for tpu_custom_call.1']
    #allocation4 [shape = 's32[1]{0}', space=sflag, size = 0x4, scoped, tag = 'scoped memory for tpu_custom_call.1']
    #allocation5 [shape = 'u8[294912]{0}', space=vmem, size = 0x48000, scoped, tag = 'input window, operand 1, single buffered']
    #allocation6 [shape = 's32[1]{0}', space=sflag, size = 0x4, scoped, tag = 'scoped memory for tpu_custom_call.1']
    #allocation7 [shape = 'u8[1024]{0}', space=vmem, size = 0x400, scoped, tag = 'output window, operand 0, single buffered']
    %8 = vsyncpa [#allocation3], 0
    %9 = vsyncpa [#allocation6], 0
    %10 = vsyncpa [#allocation4], 0
    // Predicated region
    $region2: #{tpu_custom_call.1} parent=1 // pred_check
      _
    $region3: #{tpu_custom_call.1} parent=1 // pred_check_branch
      %12 = sbr.rel (0) target = $region5
    $region4: #{tpu_custom_call.1} parent=1 // pred_region
      %14 = vsyncadd [#allocation3], 0
      %s16 = sshll.u32 %s0, 4
      %s17 = int_to_ptr.hbm [resolvable:$true] %s16
      %s18 = sshll.u32 [#allocation2], 4
      %s19 = int_to_ptr.vmem [resolvable:$true] %s18
      %21 = dma.hbm_to_vmem [thread:$0]  %s17, 160, %s19, [#allocation3]
    $region5: #{tpu_custom_call.1} parent=1 // pred_fallthru
      _
    // Predicated region
    $region6: #{tpu_custom_call.1} parent=1 // pred_check
      _
    $region7: #{tpu_custom_call.1} parent=1 // pred_check_branch
      %23 = sbr.rel (0) target = $region9
    $region8: #{tpu_custom_call.1} parent=1 // pred_region
      %25 = vsyncadd [#allocation6], 0
      %s26 = sshll.u32 %s1, 4
      %s27 = int_to_ptr.hbm [resolvable:$true] %s26
      %s28 = sshll.u32 [#allocation5], 4
      %s29 = int_to_ptr.vmem [resolvable:$true] %s28
      %34 = dma.hbm_to_vmem [thread:$0]  %s27, 9216, %s29, [#allocation6], 128, 128, 8
    $region9: #{tpu_custom_call.1} parent=1 // pred_fallthru
      _
    // Predicated region
    $region10: #{tpu_custom_call.1} parent=1 // pred_check
      _
    $region11: #{tpu_custom_call.1} parent=1 // pred_check_branch
      %36 = sbr.rel (0) target = $region13
    $region12: #{tpu_custom_call.1} parent=1 // pred_region
      _
    $region13: #{tpu_custom_call.1} parent=1 // pred_fallthru
      _
    // Predicated region
    $region14: #{tpu_custom_call.1} parent=1 // pred_check
      _
    $region15: #{tpu_custom_call.1} parent=1 // pred_check_branch
      %38 = sbr.rel (0) target = $region17
    $region16: #{tpu_custom_call.1} parent=1 // pred_region
      %40 = dma.done [#allocation3], 160
    $region17: #{tpu_custom_call.1} parent=1 // pred_fallthru
      _
    // Predicated region
    $region18: #{tpu_custom_call.1} parent=1 // pred_check
      _
    $region19: #{tpu_custom_call.1} parent=1 // pred_check_branch
      %42 = sbr.rel (0) target = $region21
    $region20: #{tpu_custom_call.1} parent=1 // pred_region
      %44 = dma.done [#allocation6], 9216
    $region21: #{tpu_custom_call.1} parent=1 // pred_fallthru
      _
    %v45 = vld [vmem:[#allocation2] sm:$0xff]
    %v46 = vld [vmem:[#allocation2 + $0x8] sm:$0x3]
    %v47 = vld [vmem:[#allocation5] sm:$0xff]
    %v48 = vld [vmem:[#allocation5 + $0x8] sm:$0xff]
    %v49 = vld [vmem:[#allocation5 + $0x10] sm:$0xff]
    %v50 = vld [vmem:[#allocation5 + $0x18] sm:$0xff]
    %v51 = vld [vmem:[#allocation5 + $0x20] sm:$0xff]
    %v52 = vld [vmem:[#allocation5 + $0x28] sm:$0xff]
    %v53 = vld [vmem:[#allocation5 + $0x30] sm:$0xff]
    %v54 = vld [vmem:[#allocation5 + $0x38] sm:$0xff]
    %v55 = vld [vmem:[#allocation5 + $0x40] sm:$0xff]
    %v56 = vld [vmem:[#allocation5 + $0x48] sm:$0xff]
    %v57 = vld [vmem:[#allocation5 + $0x50] sm:$0xff]
    %v58 = vld [vmem:[#allocation5 + $0x58] sm:$0xff]
    %v59 = vld [vmem:[#allocation5 + $0x60] sm:$0xff]
    %v60 = vld [vmem:[#allocation5 + $0x68] sm:$0xff]
    %v61 = vld [vmem:[#allocation5 + $0x70] sm:$0xff]
    %v62 = vld [vmem:[#allocation5 + $0x78] sm:$0xff]
    %v63 = vld [vmem:[#allocation5 + $0x80] sm:$0xff]
    %v64 = vld [vmem:[#allocation5 + $0x88] sm:$0xff]
    %v65 = vld [vmem:[#allocation5 + $0x90] sm:$0xff]
    %v66 = vld [vmem:[#allocation5 + $0x98] sm:$0xff]
    %v67 = vld [vmem:[#allocation5 + $0xa0] sm:$0xff]
    %v68 = vld [vmem:[#allocation5 + $0xa8] sm:$0xff]
    %v69 = vld [vmem:[#allocation5 + $0xb0] sm:$0xff]
    %v70 = vld [vmem:[#allocation5 + $0xb8] sm:$0xff]
    %v71 = vld [vmem:[#allocation5 + $0xc0] sm:$0xff]
    %v72 = vld [vmem:[#allocation5 + $0xc8] sm:$0xff]
    %v73 = vld [vmem:[#allocation5 + $0xd0] sm:$0xff]
    %v74 = vld [vmem:[#allocation5 + $0xd8] sm:$0xff]
    %v75 = vld [vmem:[#allocation5 + $0xe0] sm:$0xff]
    %v76 = vld [vmem:[#allocation5 + $0xe8] sm:$0xff]
    %v77 = vld [vmem:[#allocation5 + $0xf0] sm:$0xff]
    %v78 = vld [vmem:[#allocation5 + $0xf8] sm:$0xff]
    %v79 = vld [vmem:[#allocation5 + $0x100] sm:$0xff]
    %v80 = vld [vmem:[#allocation5 + $0x108] sm:$0xff]
    %v81 = vld [vmem:[#allocation5 + $0x110] sm:$0xff]
    %v82 = vld [vmem:[#allocation5 + $0x118] sm:$0xff]
    %v83 = vld [vmem:[#allocation5 + $0x120] sm:$0xff]
    %v84 = vld [vmem:[#allocation5 + $0x128] sm:$0xff]
    %v85 = vld [vmem:[#allocation5 + $0x130] sm:$0xff]
    %v86 = vld [vmem:[#allocation5 + $0x138] sm:$0xff]
    %v87 = vld [vmem:[#allocation5 + $0x140] sm:$0xff]
    %v88 = vld [vmem:[#allocation5 + $0x148] sm:$0xff]
    %v89 = vld [vmem:[#allocation5 + $0x150] sm:$0xff]
    %v90 = vld [vmem:[#allocation5 + $0x158] sm:$0xff]
    %v91 = vld [vmem:[#allocation5 + $0x160] sm:$0xff]
    %v92 = vld [vmem:[#allocation5 + $0x168] sm:$0xff]
    %v93 = vld [vmem:[#allocation5 + $0x170] sm:$0xff]
    %v94 = vld [vmem:[#allocation5 + $0x178] sm:$0xff]
    %v95 = vld [vmem:[#allocation5 + $0x180] sm:$0xff]
    %v96 = vld [vmem:[#allocation5 + $0x188] sm:$0xff]
    %v97 = vld [vmem:[#allocation5 + $0x190] sm:$0xff]
    %v98 = vld [vmem:[#allocation5 + $0x198] sm:$0xff]
    %v99 = vld [vmem:[#allocation5 + $0x1a0] sm:$0xff]
    %v100 = vld [vmem:[#allocation5 + $0x1a8] sm:$0xff]
    %v101 = vld [vmem:[#allocation5 + $0x1b0] sm:$0xff]
    %v102 = vld [vmem:[#allocation5 + $0x1b8] sm:$0xff]
    %v103 = vld [vmem:[#allocation5 + $0x1c0] sm:$0xff]
    %v104 = vld [vmem:[#allocation5 + $0x1c8] sm:$0xff]
    %v105 = vld [vmem:[#allocation5 + $0x1d0] sm:$0xff]
    %v106 = vld [vmem:[#allocation5 + $0x1d8] sm:$0xff]
    %v107 = vld [vmem:[#allocation5 + $0x1e0] sm:$0xff]
    %v108 = vld [vmem:[#allocation5 + $0x1e8] sm:$0xff]
    %v109 = vld [vmem:[#allocation5 + $0x1f0] sm:$0xff]
    %v110 = vld [vmem:[#allocation5 + $0x1f8] sm:$0xff]
    %v111 = vld [vmem:[#allocation5 + $0x200] sm:$0xff]
    %v112 = vld [vmem:[#allocation5 + $0x208] sm:$0xff]
    %v113 = vld [vmem:[#allocation5 + $0x210] sm:$0xff]
    %v114 = vld [vmem:[#allocation5 + $0x218] sm:$0xff]
    %v115 = vld [vmem:[#allocation5 + $0x220] sm:$0xff]
    %v116 = vld [vmem:[#allocation5 + $0x228] sm:$0xff]
    %v117 = vld [vmem:[#allocation5 + $0x230] sm:$0xff]
    %v118 = vld [vmem:[#allocation5 + $0x238] sm:$0xff]
    %v119 = vld [vmem:[%s2] sm:$0x1]
    %v121 = vperm.slane %v119, 0
    %125 = vst [vmem:[#allocation1] ss:$4 sm:$0xff] %v45
    %s126 = scalar_lea.vmem [#allocation1], 32
    %127 = vst [vmem:[%s126] ss:$4 sm:$0xff] %v46
    %v128 = vld.sshfl [vmem:[#allocation1] sm:$0xff pattern:$0x73625140]
    %v129 = vld.sshfl [vmem:[#allocation1 + $0x8] sm:$0xff pattern:$0x73625140]
    %v130 = vld.sshfl [vmem:[#allocation1 + $0x10] sm:$0xff pattern:$0x73625140]
    %v131 = vld.sshfl [vmem:[#allocation1 + $0x18] sm:$0xff pattern:$0x73625140]
    %v132 = vld.sshfl [vmem:[#allocation1 + $0x20] sm:$0xff pattern:$0x73625140]
    %vm137 = vcmask 523264
    %v138 = vsel %vm137, %v132, 0
    %140 = vmatpush.msra.mxu0 %v62
    %141 = vmatpush.msra.mxu0 %v61
    %142 = vmatpush.msra.mxu0 %v60
    %143 = vmatpush.msra.mxu0 %v59
    %144 = vmatpush.msra.mxu0 %v58
    %145 = vmatpush.msra.mxu0 %v57
    %146 = vmatpush.msra.mxu0 %v56
    %147 = vmatpush.msra.mxu0 %v55
    %148 = vmatpush.msra.mxu0 %v54
    %149 = vmatpush.msra.mxu0 %v53
    %150 = vmatpush.msra.mxu0 %v52
    %151 = vmatpush.msra.mxu0 %v51
    %152 = vmatpush.msra.mxu0 %v50
    %153 = vmatpush.msra.mxu0 %v49
    %154 = vmatpush.msra.mxu0 %v48
    %155 = vmatpush.msra.mxu0 %v47
    %156 = vmatmul.f32.gmra.mxu0 %v128
    %v157 = vpop.f32.mrf.mxu0
    %v158 = vadd.f32 %v121, %v157
    %159 = vdwg.mxu0
    %160 = vmatpush.msra.mxu0 %v78
    %161 = vmatpush.msra.mxu0 %v77
    %162 = vmatpush.msra.mxu0 %v76
    %163 = vmatpush.msra.mxu0 %v75
    %164 = vmatpush.msra.mxu0 %v74
    %165 = vmatpush.msra.mxu0 %v73
    %166 = vmatpush.msra.mxu0 %v72
    %167 = vmatpush.msra.mxu0 %v71
    %168 = vmatpush.msra.mxu0 %v70
    %169 = vmatpush.msra.mxu0 %v69
    %170 = vmatpush.msra.mxu0 %v68
    %171 = vmatpush.msra.mxu0 %v67
    %172 = vmatpush.msra.mxu0 %v66
    %173 = vmatpush.msra.mxu0 %v65
    %174 = vmatpush.msra.mxu0 %v64
    %175 = vmatpush.msra.mxu0 %v63
    %176 = vmatmul.f32.gmra.mxu0 %v129
    %v177 = vpop.f32.mrf.mxu0
    %v178 = vadd.f32 %v158, %v177
    %179 = vdwg.mxu0
    %180 = vmatpush.msra.mxu0 %v94
    %181 = vmatpush.msra.mxu0 %v93
    %182 = vmatpush.msra.mxu0 %v92
    %183 = vmatpush.msra.mxu0 %v91
    %184 = vmatpush.msra.mxu0 %v90
    %185 = vmatpush.msra.mxu0 %v89
    %186 = vmatpush.msra.mxu0 %v88
    %187 = vmatpush.msra.mxu0 %v87
    %188 = vmatpush.msra.mxu0 %v86
    %189 = vmatpush.msra.mxu0 %v85
    %190 = vmatpush.msra.mxu0 %v84
    %191 = vmatpush.msra.mxu0 %v83
    %192 = vmatpush.msra.mxu0 %v82
    %193 = vmatpush.msra.mxu0 %v81
    %194 = vmatpush.msra.mxu0 %v80
    %195 = vmatpush.msra.mxu0 %v79
    %196 = vmatmul.f32.gmra.mxu0 %v130
    %v197 = vpop.f32.mrf.mxu0
    %v198 = vadd.f32 %v178, %v197
    %199 = vdwg.mxu0
    %200 = vmatpush.msra.mxu0 %v110
    %201 = vmatpush.msra.mxu0 %v109
    %202 = vmatpush.msra.mxu0 %v108
    %203 = vmatpush.msra.mxu0 %v107
    %204 = vmatpush.msra.mxu0 %v106
    %205 = vmatpush.msra.mxu0 %v105
    %206 = vmatpush.msra.mxu0 %v104
    %207 = vmatpush.msra.mxu0 %v103
    %208 = vmatpush.msra.mxu0 %v102
    %209 = vmatpush.msra.mxu0 %v101
    %210 = vmatpush.msra.mxu0 %v100
    %211 = vmatpush.msra.mxu0 %v99
    %212 = vmatpush.msra.mxu0 %v98
    %213 = vmatpush.msra.mxu0 %v97
    %214 = vmatpush.msra.mxu0 %v96
    %215 = vmatpush.msra.mxu0 %v95
    %216 = vmatmul.f32.gmra.mxu0 %v131
    %v217 = vpop.f32.mrf.mxu0
    %v218 = vadd.f32 %v198, %v217
    %219 = vdwg.mxu0
    %220 = vmatpush.msra.mxu0 0.0
    %221 = vmatpush.msra.mxu0 0.0
    %222 = vmatpush.msra.mxu0 0.0
    %223 = vmatpush.msra.mxu0 0.0
    %224 = vmatpush.msra.mxu0 0.0
    %225 = vmatpush.msra.mxu0 0.0
    %226 = vmatpush.msra.mxu0 0.0
    %227 = vmatpush.msra.mxu0 0.0
    %228 = vmatpush.msra.mxu0 %v118
    %229 = vmatpush.msra.mxu0 %v117
    %230 = vmatpush.msra.mxu0 %v116
    %231 = vmatpush.msra.mxu0 %v115
    %232 = vmatpush.msra.mxu0 %v114
    %233 = vmatpush.msra.mxu0 %v113
    %234 = vmatpush.msra.mxu0 %v112
    %235 = vmatpush.msra.mxu0 %v111
    %236 = vmatmul.f32.gmra.mxu0 %v138
    %v237 = vpop.f32.mrf.mxu0
    %v238 = vadd.f32 %v218, %v237
    %239 = vdwg.mxu0
    %v240 = vtanh.pop %v238
    %241 = vst [vmem:[#allocation7] sm:$0x3] %v240
    // Predicated region
    $region22: #{tpu_custom_call.1} parent=1 // pred_check
      _
    $region23: #{tpu_custom_call.1} parent=1 // pred_check_branch
      %243 = sbr.rel (0) target = $region25
    $region24: #{tpu_custom_call.1} parent=1 // pred_region
      %245 = vsyncadd [#allocation4], 0
      %s247 = sshll.u32 [#allocation7], 4
      %s248 = int_to_ptr.vmem [resolvable:$true] %s247
      %s249 = sshll.u32 %s3, 4
      %s250 = int_to_ptr.hbm [resolvable:$true] %s249
      %252 = dma.vmem_to_hbm [thread:$0]  %s248, 32, %s250, [#allocation4]
    $region25: #{tpu_custom_call.1} parent=1 // pred_fallthru
      _
    // Predicated region
    $region26: #{tpu_custom_call.1} parent=1 // pred_check
      _
    $region27: #{tpu_custom_call.1} parent=1 // pred_check_branch
      %254 = sbr.rel (0) target = $region29
    $region28: #{tpu_custom_call.1} parent=1 // pred_region
      %256 = dma.done [#allocation4], 32
    $region29: #{tpu_custom_call.1} parent=1 // pred_fallthru
      _
    %257 = vsyncpa [#allocation3], 1
    %258 = vsyncpa [#allocation6], 1
    %259 = vsyncpa [#allocation4], 1

</llo_original>
